<compile_context>
chip_gen: v6e
topology: v6e:2x2x1
jax: 0.10.0
libtpu: 0.0.40
codegen_flags: <defaults>
</compile_context>

<pallas_src>
import math

import jax
import jax.numpy as jnp
from jax.experimental import pallas as pl
from jax.experimental.pallas import tpu as pltpu


# --------------------------------------------------------------------------
# Generation-aware VMEM limit
# --------------------------------------------------------------------------

def _vmem_limit_bytes():
    cap = None
    try:
        cap = int(getattr(pltpu.get_tpu_info(), "vmem_capacity_bytes", 0)) or None
    except Exception:
        cap = None
    if cap is None:
        return 64 << 20                         # safe default
    # 128 MiB parts (v5e/v6e) -> ~96 MiB; 64 MiB parts (v7x) -> 32 MiB.
    return int(min(max(cap - (32 << 20), cap // 2), 112 << 20))


_VMEM_LIMIT = _vmem_limit_bytes()
_MXU_K = 256        # target contraction depth for tap grouping (v6e/v7x MXU)


# --------------------------------------------------------------------------
# Slab / im2col construction (plain-JAX glue, bf16, ~1x HBM traffic)
# --------------------------------------------------------------------------

def _tap_slab(x, k, stride, pad, pad_value):
    """Pad + stride-phase-decompose + flatten: (N,H,W,C) -> (N, s*s, Lp, C).

    For tap (ki, kj) (ki = pi + s*a, kj = pj + s*b) the window needed for the
    whole dilated output plane (Ho rows x Wq cols, first Wo cols valid) is the
    contiguous slice  slab[n, pi*s+pj, a*Wq + b : a*Wq + b + Ho*Wq, :].
    """
    N, H, W, C = x.shape
    s = stride
    Hp, Wp = H + 2 * pad, W + 2 * pad
    Ho = (Hp - k) // s + 1
    Wo = (Wp - k) // s + 1
    q = -(-k // s)                       # ceil(k / s)
    Hq1 = Ho - 1 + q + 1                 # +1 spare row keeps every tap slice in-bounds
    Wq = Wo - 1 + q
    xp = jnp.pad(
        x,
        ((0, 0), (pad, pad + s * Hq1 - Hp), (pad, pad + s * Wq - Wp), (0, 0)),
        constant_values=pad_value,
    )
    slab = xp.reshape(N, Hq1, s, Wq, s, C)
    slab = jnp.transpose(slab, (0, 2, 4, 1, 3, 5)).reshape(N, s * s, Hq1 * Wq, C)
    return slab, Ho, Wo, Wq


def _im2col(x, k, stride, pad):
    """(N,H,W,C) -> (N,Ho,Wo,k*k*C) patches (tap-major, channel-minor)."""
    N, H, W, C = x.shape
    Ho = (H + 2 * pad - k) // stride + 1
    Wo = (W + 2 * pad - k) // stride + 1
    xp = jnp.pad(x, ((0, 0), (pad, pad), (pad, pad), (0, 0)))
    cols = [
        xp[:, ki:ki + stride * (Ho - 1) + 1:stride,
              kj:kj + stride * (Wo - 1) + 1:stride, :]
        for ki in range(k) for kj in range(k)
    ]
    return jnp.concatenate(cols, axis=-1)


# --------------------------------------------------------------------------
# Pallas kernels
# --------------------------------------------------------------------------

def _make_conv_kernel(k, stride, wq, md, ho, wo, cin, group, relu, has_res):
    s = stride
    n_taps = k * k

    def kernel(x_ref, w_ref, b_ref, *rest):
        # x_ref : (s*s, Lp, Cin)       bf16  (all phases of one image, resident)
        # w_ref : (k*k*Cin, Cout)      bf16  (BN scale folded in)
        # b_ref : (1, Cout)            f32
        # r_ref : (Ho, Wo, Cout)       bf16  (optional residual)
        # o_ref : (Ho, Wo, Cout)       bf16
        # acc   : (Md, Cout)           f32   VMEM scratch
        if has_res:
            r_ref, o_ref, acc_ref = rest
        else:
            o_ref, acc_ref = rest

        first = True
        for t0 in range(0, n_taps, group):
            gs = min(group, n_taps - t0)
            parts = []
            for t in range(t0, t0 + gs):
                ki, kj = t // k, t % k
                ph = (ki % s) * s + (kj % s)
                off = (ki // s) * wq + (kj // s)          # static offsets
                parts.append(x_ref[ph, off:off + md, :])
            xs = parts[0] if gs == 1 else jnp.concatenate(parts, axis=-1)
            ws = w_ref[t0 * cin:(t0 + gs) * cin, :]        # contiguous weight slice
            contrib = jnp.dot(xs, ws, preferred_element_type=jnp.float32)
            if first:
                acc_ref[...] = contrib
                first = False
            else:
                acc_ref[...] += contrib

        bias = b_ref[...]                                   # (1, Cout) f32

        def _row(i, carry):
            # un-dilate: keep only the first wo of the wq columns of row i
            row = acc_ref[pl.ds(i * wq, wo), :] + bias
            if has_res:
                row = row + r_ref[i, :, :].astype(jnp.float32)
            if relu:
                row = jnp.maximum(row, 0.0)
            o_ref[i, :, :] = row.astype(o_ref.dtype)
            return carry

        jax.lax.fori_loop(0, ho, _row, 0)

    return kernel


def _make_pool_kernel(k, stride, wq, md, ho, wo):
    s = stride

    def kernel(x_ref, o_ref, mx_ref):
        first = True
        for ki in range(k):
            for kj in range(k):
                ph = (ki % s) * s + (kj % s)
                off = (ki // s) * wq + (kj // s)
                v = x_ref[ph, off:off + md, :]
                if first:
                    mx_ref[...] = v
                    first = False
                else:
                    mx_ref[...] = jnp.maximum(mx_ref[...], v)

        def _row(i, carry):
            o_ref[i, :, :] = mx_ref[pl.ds(i * wq, wo), :]
            return carry

        jax.lax.fori_loop(0, ho, _row, 0)

    return kernel


def _head_kernel(x_ref, w_ref, b_ref, o_ref):
    # adaptive avg pool (mean over HW) -> linear (bf16 matmul, f32 accumulate)
    feat = jnp.mean(x_ref[...].astype(jnp.float32), axis=1)
    o_ref[...] = (
        jnp.dot(feat.astype(jnp.bfloat16), w_ref[...],
                preferred_element_type=jnp.float32)
        + b_ref[...]
    )


# --------------------------------------------------------------------------
# Layer wrappers
# --------------------------------------------------------------------------

def conv_bn_act(x, w_taps, bias, *, k, stride, pad, relu, residual=None):
    """Fused conv + folded-BN bias + optional residual + ReLU.

    x:        (N, H, W, Cin)   bf16 activations
    w_taps:   (k*k, Cin, Cout) bf16 weights (BN scale folded in)
    bias:     (1, Cout)        f32 folded BN bias
    residual: (N, Ho, Wo, Cout) bf16 or None
    returns   (N, Ho, Wo, Cout) bf16
    """
    if k == 1 and stride > 1:                 # 1x1 downsample: subsample first
        x = x[:, ::stride, ::stride, :]
        stride = 1

    N, H, W, Cin = x.shape
    Cout = w_taps.shape[-1]
    slab, Ho, Wo, Wq = _tap_slab(x, k, stride, pad, 0.0)
    s2 = stride * stride
    Lp = slab.shape[2]
    Md = Ho * Wq
    group = max(1, min(_MXU_K // Cin, k * k))      # taps fused along K per matmul
    w2d = w_taps.reshape(k * k * Cin, Cout)

    has_res = residual is not None
    args = [slab, w2d, bias]
    in_specs = [
        pl.BlockSpec((None, s2, Lp, Cin), lambda n: (n, 0, 0, 0)),
        pl.BlockSpec((k * k * Cin, Cout), lambda n: (0, 0)),
        pl.BlockSpec((1, Cout), lambda n: (0, 0)),
    ]
    if has_res:
        args.append(residual)
        in_specs.append(pl.BlockSpec((None, Ho, Wo, Cout), lambda n: (n, 0, 0, 0)))

    return pl.pallas_call(
        _make_conv_kernel(k, stride, Wq, Md, Ho, Wo, Cin, group, relu, has_res),
        out_shape=jax.ShapeDtypeStruct((N, Ho, Wo, Cout), jnp.bfloat16),
        grid=(N,),
        in_specs=in_specs,
        out_specs=pl.BlockSpec((None, Ho, Wo, Cout), lambda n: (n, 0, 0, 0)),
        scratch_shapes=[pltpu.VMEM((Md, Cout), jnp.float32)],
        compiler_params=pltpu.CompilerParams(
            dimension_semantics=("parallel",),
            vmem_limit_bytes=_VMEM_LIMIT,
        ),
    )(*args)


def maxpool2d(x, *, k=3, stride=2, pad=1):
    N, H, W, C = x.shape
    slab, Ho, Wo, Wq = _tap_slab(x, k, stride, pad, -jnp.inf)
    s2 = stride * stride
    Lp = slab.shape[2]
    Md = Ho * Wq
    return pl.pallas_call(
        _make_pool_kernel(k, stride, Wq, Md, Ho, Wo),
        out_shape=jax.ShapeDtypeStruct((N, Ho, Wo, C), jnp.bfloat16),
        grid=(N,),
        in_specs=[pl.BlockSpec((None, s2, Lp, C), lambda n: (n, 0, 0, 0))],
        out_specs=pl.BlockSpec((None, Ho, Wo, C), lambda n: (n, 0, 0, 0)),
        scratch_shapes=[pltpu.VMEM((Md, C), jnp.bfloat16)],
        compiler_params=pltpu.CompilerParams(
            dimension_semantics=("parallel",),
            vmem_limit_bytes=_VMEM_LIMIT,
        ),
    )(slab)


def head_pool_linear(x, w, b):
    # x: (N, H, W, C) -> adaptive avg pool (1,1) -> flatten -> linear
    N, H, W, C = x.shape
    num_classes = w.shape[1]
    xr = x.reshape(N, H * W, C)
    return pl.pallas_call(
        _head_kernel,
        out_shape=jax.ShapeDtypeStruct((N, num_classes), jnp.float32),
        grid=(1,),
        in_specs=[
            pl.BlockSpec((N, H * W, C), lambda i: (0, 0, 0)),
            pl.BlockSpec((C, num_classes), lambda i: (0, 0)),
            pl.BlockSpec((1, num_classes), lambda i: (0, 0)),
        ],
        out_specs=pl.BlockSpec((N, num_classes), lambda i: (0, 0)),
        compiler_params=pltpu.CompilerParams(
            dimension_semantics=("arbitrary",),
            vmem_limit_bytes=_VMEM_LIMIT,
        ),
    )(xr, w, b)


def basic_block(x, blk):
    s = blk["stride"]
    out = conv_bn_act(x, blk["w1"], blk["b1"], k=3, stride=s, pad=1, relu=True)
    if "wskip" in blk:
        skip = conv_bn_act(x, blk["wskip"], blk["bskip"],
                           k=1, stride=s, pad=0, relu=False)
    else:
        skip = x
    return conv_bn_act(out, blk["w2"], blk["b2"], k=3, stride=1, pad=1,
                       relu=True, residual=skip)


def resnet_forward(x_nchw, params):
    x = jnp.transpose(x_nchw, (0, 2, 3, 1)).astype(jnp.bfloat16)   # NCHW -> NHWC
    cin0 = x.shape[-1]
    # 7x7/2 stem as one im2col matmul (K = 7*7*3 = 147), then BN+ReLU epilogue.
    xcol = _im2col(x, k=7, stride=2, pad=3)
    w0 = params["conv0_w"].reshape(1, 7 * 7 * cin0, -1)
    x = conv_bn_act(xcol, w0, params["bn0_b"], k=1, stride=1, pad=0, relu=True)
    x = maxpool2d(x, k=3, stride=2, pad=1)
    for stage in ("layer1", "layer2", "layer3", "layer4"):
        for blk in params[stage]:
            x = basic_block(x, blk)
    return head_pool_linear(x, params["fc_w"], params["fc_b"])


# --------------------------------------------------------------------------
# Deterministic parameter initialization (mirrors the PyTorch __init__)
# --------------------------------------------------------------------------

def _bn_fold(cout, eps=1e-5):
    gamma = jnp.ones((cout,), jnp.float32)
    beta = jnp.zeros((cout,), jnp.float32)
    mean = jnp.zeros((cout,), jnp.float32)
    var = jnp.ones((cout,), jnp.float32)
    scale = gamma / jnp.sqrt(var + eps)
    bias = (beta - mean * scale).reshape(1, cout)
    return scale, bias


def _conv_w(key, cin, cout, k, scale):
    # kaiming_normal_, mode='fan_out', nonlinearity='relu'; BN scale folded in.
    std = math.sqrt(2.0 / (cout * k * k))
    w = std * jax.random.normal(key, (k * k, cin, cout), jnp.float32)
    w = w * scale[None, None, :]
    return w.astype(jnp.bfloat16)


def init_params(key, num_classes=1000):
    keys = iter(jax.random.split(key, 64))
    p = {}
    s0, b0 = _bn_fold(64)
    p["conv0_w"] = _conv_w(next(keys), 3, 64, 7, s0)
    p["bn0_b"] = b0

    stage_specs = [
        ("layer1", 64, 64, [1, 1]),
        ("layer2", 64, 128, [2, 1]),
        ("layer3", 128, 256, [2, 1]),
        ("layer4", 256, 512, [2, 1]),
    ]
    for name, cin, cout, strides in stage_specs:
        blocks = []
        c_in = cin
        for s in strides:
            blk = {"stride": s}
            s1, b1 = _bn_fold(cout)
            blk["w1"] = _conv_w(next(keys), c_in, cout, 3, s1)
            blk["b1"] = b1
            s2, b2 = _bn_fold(cout)
            blk["w2"] = _conv_w(next(keys), cout, cout, 3, s2)
            blk["b2"] = b2
            if s > 1 or c_in != cout:
                ss, bs = _bn_fold(cout)
                blk["wskip"] = _conv_w(next(keys), c_in, cout, 1, ss)
                blk["bskip"] = bs
            blocks.append(blk)
            c_in = cout
        p[name] = blocks

    kw, kb = jax.random.split(next(keys))
    bound = 1.0 / math.sqrt(512)
    p["fc_w"] = jax.random.uniform(
        kw, (512, num_classes), jnp.float32, -bound, bound).astype(jnp.bfloat16)
    p["fc_b"] = jax.random.uniform(kb, (1, num_classes), jnp.float32, -bound, bound)
    return p


# --------------------------------------------------------------------------

if __name__ == "__main__":
    key = jax.random.PRNGKey(0)
    kx, kp = jax.random.split(key)

    # Small NCHW input consistent with the module (3 input channels).
    x = jax.random.normal(kx, (2, 3, 32, 32), jnp.float32)
    params = init_params(kp, num_classes=1000)

    out = resnet_forward(x, params)
    out = jax.block_until_ready(out)
    assert out.shape == (2, 1000) and out.dtype == jnp.float32
    assert bool(jnp.all(jnp.isfinite(out)))
    print("KERNEL_OK")
</pallas_src>

<mosaic_0001>
module attributes {stable_mosaic.version = 11 : i64} {
  func.func @kernel(%arg0: i32, %arg1: memref<1x1x272x147xbf16, #tpu.memory_space<vmem>>, %arg2: memref<147x64xbf16, #tpu.memory_space<vmem>>, %arg3: memref<1x64xf32, #tpu.memory_space<vmem>>, %arg4: memref<1x16x16x64xbf16, #tpu.memory_space<vmem>>, %arg5: memref<256x64xf32, #tpu.memory_space<vmem>>) attributes {dimension_semantics = [#tpu.dimension_semantics<parallel>], iteration_bounds = array<i64: 2>, scalar_prefetch = 0 : i64, scratch_operands = 1 : i64, tpu.core_type = #tpu.core_type<tc>, window_params = [{transform_indices = @transform_0, window_bounds = array<i64: 1, 1, 272, 147>}, {pipeline_mode = #tpu.pipeline_mode<synchronous>, transform_indices = @transform_1, window_bounds = array<i64: 147, 64>}, {pipeline_mode = #tpu.pipeline_mode<synchronous>, transform_indices = @transform_2, window_bounds = array<i64: 1, 64>}, {transform_indices = @transform_3, window_bounds = array<i64: 1, 16, 16, 64>}]} {
    %c0 = arith.constant 0 : index
    %c0_0 = arith.constant 0 : index
    %c0_1 = arith.constant 0 : index
    %c0_2 = arith.constant 0 : index
    %0 = vector.load %arg1[%c0, %c0_0, %c0_1, %c0_2] : memref<1x1x272x147xbf16, #tpu.memory_space<vmem>>, vector<1x1x256x147xbf16>
    %1 = vector.shape_cast %0 : vector<1x1x256x147xbf16> to vector<256x147xbf16>
    %c0_3 = arith.constant 0 : index
    %c0_4 = arith.constant 0 : index
    %2 = vector.load %arg2[%c0_3, %c0_4] : memref<147x64xbf16, #tpu.memory_space<vmem>>, vector<147x64xbf16>
    %cst = arith.constant dense<0.000000e+00> : vector<256x64xf32>
    %3 = tpu.matmul %1, %2, %cst {dimension_numbers = #tpu.dot_dimension_numbers<[1], [0], [0], [1], [0, 0, 1, 1], [], []>} : vector<256x147xbf16>, vector<147x64xbf16>, vector<256x64xf32> -> vector<256x64xf32>
    %c0_5 = arith.constant 0 : index
    %c0_6 = arith.constant 0 : index
    %4 = vector.load %arg5[%c0_5, %c0_6] : memref<256x64xf32, #tpu.memory_space<vmem>>, vector<256x64xf32>
    tpu.vector_store %arg5[%c0_5, %c0_6], %3 {strides = array<i32>} : memref<256x64xf32, #tpu.memory_space<vmem>>, vector<256x64xf32>,
    %c0_7 = arith.constant 0 : index
    %c0_8 = arith.constant 0 : index
    %5 = vector.load %arg3[%c0_7, %c0_8] : memref<1x64xf32, #tpu.memory_space<vmem>>, vector<1x64xf32>
    %c0_i32 = arith.constant 0 : i32
    %c16_i32 = arith.constant 16 : i32
    %6 = arith.addi %c0_i32, %c16_i32 : i32
    %c1_i32 = arith.constant 1 : i32
    scf.for %arg6 = %c0_i32 to %6 step %c1_i32  : i32 {
      %c16_i32_10 = arith.constant 16 : i32
      %7 = arith.muli %arg6, %c16_i32_10 : i32
      %8 = arith.index_cast %7 : i32 to index
      %c0_11 = arith.constant 0 : index
      %9 = vector.load %arg5[%8, %c0_11] : memref<256x64xf32, #tpu.memory_space<vmem>>, vector<16x64xf32>
      %10 = vector.broadcast %5 : vector<1x64xf32> to vector<16x64xf32>
      %11 = arith.addf %9, %10 : vector<16x64xf32>
      %cst_12 = arith.constant 0.000000e+00 : f32
      %12 = vector.broadcast %cst_12 : f32 to vector<16x64xf32>
      %13 = arith.maximumf %11, %12 : vector<16x64xf32>
      %14 = arith.truncf %13 : vector<16x64xf32> to vector<16x64xbf16>
      %c0_13 = arith.constant 0 : index
      %15 = arith.index_cast %arg6 : i32 to index
      %c0_14 = arith.constant 0 : index
      %c0_15 = arith.constant 0 : index
      %16 = vector.load %arg4[%c0_13, %15, %c0_14, %c0_15] : memref<1x16x16x64xbf16, #tpu.memory_space<vmem>>, vector<1x1x16x64xbf16>
      %17 = vector.shape_cast %16 : vector<1x1x16x64xbf16> to vector<16x64xbf16>
      %18 = vector.shape_cast %14 : vector<16x64xbf16> to vector<1x1x16x64xbf16>
      tpu.vector_store %arg4[%c0_13, %15, %c0_14, %c0_15], %18 {strides = array<i32>} : memref<1x16x16x64xbf16, #tpu.memory_space<vmem>>, vector<1x1x16x64xbf16>,
    }
    %c16_i32_9 = arith.constant 16 : i32
    return
  }
  func.func @transform_0(%arg0: i32) -> (i32, i32, i32, i32) {
    %c0_i32 = arith.constant 0 : i32
    %c0_i32_0 = arith.constant 0 : i32
    %c0_i32_1 = arith.constant 0 : i32
    %c0_i32_2 = arith.constant 0 : i32
    return %arg0, %c0_i32, %c0_i32_0, %c0_i32_1 : i32, i32, i32, i32
  }
  func.func @transform_1(%arg0: i32) -> (i32, i32) {
    %c0_i32 = arith.constant 0 : i32
    %c0_i32_0 = arith.constant 0 : i32
    %c0_i32_1 = arith.constant 0 : i32
    return %c0_i32, %c0_i32_0 : i32, i32
  }
  func.func @transform_2(%arg0: i32) -> (i32, i32) {
    %c0_i32 = arith.constant 0 : i32
    %c0_i32_0 = arith.constant 0 : i32
    %c0_i32_1 = arith.constant 0 : i32
    return %c0_i32, %c0_i32_0 : i32, i32
  }
  func.func @transform_3(%arg0: i32) -> (i32, i32, i32, i32) {
    %c0_i32 = arith.constant 0 : i32
    %c0_i32_0 = arith.constant 0 : i32
    %c0_i32_1 = arith.constant 0 : i32
    %c0_i32_2 = arith.constant 0 : i32
    return %arg0, %c0_i32, %c0_i32_0, %c0_i32_1 : i32, i32, i32, i32
  }
}

</mosaic_0001>

<llo_original>
// kernel: tpu_custom_call.1
$region0: #{tpu_custom_call.1}
  #allocation0 [shape = 'u32[]', space=smem, size = 0x4, offset = 0x4, fixed_abs, tag = 'smem constant byte address 0x4 - core index']
  #allocation1 [shape = 'u32[144,128]{1,0:T(1,128)}', space=vmem, size = 0x12000, scoped, tag = 'internal scratch']
  #allocation2 [shape = 'f32[256,64]{1,0:T(8,128)}', space=vmem, size = 0x20000, scoped, tag = 'scratch operand']
  %s0 = inlined_call_operand.vmem [shape: bf16[2,1,272,147], index: 0, kind: input, shape index: {}]
  %s1 = inlined_call_operand.vmem [shape: bf16[147,64], index: 1, kind: input, shape index: {}]
  %s2 = inlined_call_operand.vmem [shape: f32[1,64], index: 2, kind: input, shape index: {}]
  %s3 = inlined_call_operand.hbm [shape: bf16[2,16,16,64], index: 3, kind: output, shape index: {}]
  %s4 = sld [smem:[#allocation0]]
  $region52: #{tpu_custom_call.1} parent=0
    _
  %s6 = ssub.s32 1, %s4
  %s7 = scalar_select 0, %s6, %s4
  $region1: #{tpu_custom_call.1} parent=0
    #allocation3 [shape = 'u8[131072]{0}', space=vmem, size = 0x20000, scoped, tag = 'output window, operand 0']
    #allocation4 [shape = 's32[2]{0}', space=sflag, size = 0x8, scoped, tag = 'scoped memory for tpu_custom_call.1']
    %8 = vsyncpa [#allocation4], 0
    %s9 = scalar_lea.sflag [#allocation4], 1
    %10 = vsyncpa %s9, 0
    loop: start=0, step=1, limit=4
    $region2: #{tpu_custom_call.1} parent=1 // loop_pre_header
      _
    $region3: #{tpu_custom_call.1} parent=1 // loop_header
      %s12 = sphi 0, %s16
      %p13 = scmp.ge.s32.totalorder %s12, 4
      %s22 = sphi 0, %s24
      %s25 = sphi 0, %s22
      %s26 = sphi 0, %s25
      %s42 = sphi 0, %s26
      %s46 = sphi 0, %s46
      %s48 = sphi 0, %s46
      %s49 = sphi 0, %s48
      %s63 = sphi 0, %s49
      %s67 = sphi 0, %s67
      %s69 = sphi 0, %s67
      %s70 = sphi 0, %s69
      %s84 = sphi 0, %s70
      %s90 = sphi 0, %s92
      %s93 = sphi 0, %s90
      %s94 = sphi 0, %s93
      %s110 = sphi 0, %s94
    $region4: #{tpu_custom_call.1} parent=1 // loop_header_branch
      %15 = sbr.rel (%p13) target = $region8
    $region5: #{tpu_custom_call.1} parent=1 // loop_body
      %s17 = ssub.s32 %s12, 1
      %s18 = ssub.s32 %s12, 2
      %s19 = sadd.s32 %s12, 1
      %s20 = ssub.s32 %s12, %s19
      %p21 = scmp.eq.s32.totalorder %s20, 0
      %s23 = sadd.s32 %s22, 1
      %s24 = scalar_select %p21, %s22, %s23
      %p27 = pneg %p21
      %p28 = scmp.eq.s32.totalorder %s12, 1
      %p29 = por %p27, %p28
      %p30 = scmp.ne.s32.totalorder %s22, %s25
      %p31 = scmp.eq.s32.totalorder %s12, 0
      %p32 = por %p30, %p31
      %p33 = scmp.ne.s32.totalorder %s22, %s25
      %p34 = scmp.eq.s32.totalorder %s17, 1
      %p35 = por %p33, %p34
      %p36 = scmp.ne.s32.totalorder %s25, %s26
      %p37 = scmp.eq.s32.totalorder %s17, 0
      %p38 = por %p36, %p37
      %p39 = scmp.ne.s32.totalorder %s25, %s26
      %p40 = scmp.eq.s32.totalorder %s18, 1
      %p41 = por %p39, %p40
      %p43 = scmp.ne.s32.totalorder %s26, %s42
      %p44 = scmp.eq.s32.totalorder %s18, 0
      %p45 = por %p43, %p44
      %s47 = sadd.s32 %s46, 1
      %p50 = scmp.eq.s32.totalorder %s12, 1
      %p51 = scmp.ne.s32.totalorder %s46, %s48
      %p52 = scmp.eq.s32.totalorder %s12, 0
      %p53 = por %p51, %p52
      %p54 = scmp.ne.s32.totalorder %s46, %s48
      %p55 = scmp.eq.s32.totalorder %s17, 1
      %p56 = por %p54, %p55
      %p57 = scmp.ne.s32.totalorder %s48, %s49
      %p58 = scmp.eq.s32.totalorder %s17, 0
      %p59 = por %p57, %p58
      %p60 = scmp.ne.s32.totalorder %s48, %s49
      %p61 = scmp.eq.s32.totalorder %s18, 1
      %p62 = por %p60, %p61
      %p64 = scmp.ne.s32.totalorder %s49, %s63
      %p65 = scmp.eq.s32.totalorder %s18, 0
      %p66 = por %p64, %p65
      %s68 = sadd.s32 %s67, 1
      %p71 = scmp.eq.s32.totalorder %s12, 1
      %p72 = scmp.ne.s32.totalorder %s67, %s69
      %p73 = scmp.eq.s32.totalorder %s12, 0
      %p74 = por %p72, %p73
      %p75 = scmp.ne.s32.totalorder %s67, %s69
      %p76 = scmp.eq.s32.totalorder %s17, 1
      %p77 = por %p75, %p76
      %p78 = scmp.ne.s32.totalorder %s69, %s70
      %p79 = scmp.eq.s32.totalorder %s17, 0
      %p80 = por %p78, %p79
      %p81 = scmp.ne.s32.totalorder %s69, %s70
      %p82 = scmp.eq.s32.totalorder %s18, 1
      %p83 = por %p81, %p82
      %p85 = scmp.ne.s32.totalorder %s70, %s84
      %p86 = scmp.eq.s32.totalorder %s18, 0
      %p87 = por %p85, %p86
      %s88 = ssub.s32 %s12, %s19
      %p89 = scmp.eq.s32.totalorder %s88, 0
      %s91 = sadd.s32 %s90, 1
      %s92 = scalar_select %p89, %s90, %s91
      %p95 = pneg %p89
      %p96 = scmp.eq.s32.totalorder %s12, 1
      %p97 = por %p95, %p96
      %p98 = scmp.ne.s32.totalorder %s90, %s93
      %p99 = scmp.eq.s32.totalorder %s12, 0
      %p100 = por %p98, %p99
      %p101 = scmp.ne.s32.totalorder %s90, %s93
      %p102 = scmp.eq.s32.totalorder %s17, 1
      %p103 = por %p101, %p102
      %p104 = scmp.ne.s32.totalorder %s93, %s94
      %p105 = scmp.eq.s32.totalorder %s17, 0
      %p106 = por %p104, %p105
      %p107 = scmp.ne.s32.totalorder %s93, %s94
      %p108 = scmp.eq.s32.totalorder %s18, 1
      %p109 = por %p107, %p108
      %p111 = scmp.ne.s32.totalorder %s94, %s110
      %p112 = scmp.eq.s32.totalorder %s18, 0
      %p113 = por %p111, %p112
      %p114 = scmp.le.s32.totalorder 1, %s12
      %p115 = scmp.lt.s32.totalorder %s12, 3
      %p116 = pnand %p114, %p115
      %p117 = pneg %p116
      // Predicated region
      $region9: #{tpu_custom_call.1} parent=5 // pred_check
        _
      $region10: #{tpu_custom_call.1} parent=5 // pred_check_branch
        %119 = sbr.rel (%p116) target = $region12
      $region11: #{tpu_custom_call.1} parent=5 // pred_region
        %s120 = ssub.s32 %s12, 1
        // Predicated region
        $region13: #{tpu_custom_call.1} parent=11 // pred_check
          %p121 = pneg %p59
        $region14: #{tpu_custom_call.1} parent=11 // pred_check_branch
          %123 = sbr.rel (%p121) target = $region16
        $region15: #{tpu_custom_call.1} parent=11 // pred_region
          _
        $region16: #{tpu_custom_call.1} parent=11 // pred_fallthru
          _
        // Predicated region
        $region17: #{tpu_custom_call.1} parent=11 // pred_check
          %p124 = pneg %p80
        $region18: #{tpu_custom_call.1} parent=11 // pred_check_branch
          %126 = sbr.rel (%p124) target = $region20
        $region19: #{tpu_custom_call.1} parent=11 // pred_region
          _
        $region20: #{tpu_custom_call.1} parent=11 // pred_fallthru
          _
      $region12: #{tpu_custom_call.1} parent=5 // pred_fallthru
        _
      %p127 = scmp.lt.s32.totalorder %s12, 2
      // Predicated region
      $region21: #{tpu_custom_call.1} parent=5 // pred_check
        %p128 = pneg %p127
      $region22: #{tpu_custom_call.1} parent=5 // pred_check_branch
        %130 = sbr.rel (%p128) target = $region24
      $region23: #{tpu_custom_call.1} parent=5 // pred_region
        // Predicated region
        $region25: #{tpu_custom_call.1} parent=23 // pred_check
          %p131 = pneg %p32
        $region26: #{tpu_custom_call.1} parent=23 // pred_check_branch
          %133 = sbr.rel (%p131) target = $region28
        $region27: #{tpu_custom_call.1} parent=23 // pred_region
          %p134 = scmp.lt.s32.totalorder %s12, 1
          %s135 = scalar_select %p134, %s12, 1
          %s136 = smul.addr %s135, 68
          %s137 = smul.addr %s136, 4
          %s138 = scalar_lea.vmem %s0, %s137
        $region28: #{tpu_custom_call.1} parent=23 // pred_fallthru
          _
      $region24: #{tpu_custom_call.1} parent=5 // pred_fallthru
        _
      %p139 = scmp.le.s32.totalorder 1, %s12
      %p140 = scmp.lt.s32.totalorder %s12, 3
      %p141 = pnand %p139, %p140
      %p142 = pneg %p141
      // Predicated region
      $region29: #{tpu_custom_call.1} parent=5 // pred_check
        _
      $region30: #{tpu_custom_call.1} parent=5 // pred_check_branch
        %144 = sbr.rel (%p141) target = $region32
      $region31: #{tpu_custom_call.1} parent=5 // pred_region
        %s145 = ssub.s32 %s12, 1
        %p146 = scmp.lt.s32.totalorder %s17, 1
        %s147 = scalar_select %p146, %s17, 1
        %s148 = smul.addr %s147, 68
        %s149 = smul.addr %s148, 4
        %s150 = scalar_lea.vmem %s0, %s149
        %p151 = pneg %p38
        %p152 = pneg %p35
        %p153 = pneg %p59
        %p154 = pneg %p56
        %p155 = pneg %p80
        %p156 = pneg %p77
        %p157 = pneg %p106
        %p158 = pneg %p103
        %s159 = sand.u32 %s93, 1
        %s160 = scalar_lea.sflag [#allocation4], %s159
        %s161 = sand.u32 %s93, 1
        %s162 = smul.addr %s161, 128
        %s163 = scalar_lea.vmem [#allocation3], %s162
        %p164 = scmp.lt.s32.totalorder %s17, 1
        %s165 = scalar_select %p164, %s17, 1
        %s166 = smul.addr %s165, 68
        %s167 = smul.addr %s166, 4
        %s168 = scalar_lea.vmem %s0, %s167
        %v170 = vld [vmem:[%s168] sm:$0xff]
        %v171 = vld [vmem:[%s168 + $0x8] sm:$0xff]
        %v172 = vld [vmem:[%s168 + $0x10] sm:$0xff]
        %v173 = vld [vmem:[%s168 + $0x18] sm:$0xff]
        %v174 = vld [vmem:[%s168 + $0x20] sm:$0xff]
        %v175 = vld [vmem:[%s168 + $0x28] sm:$0xff]
        %v176 = vld [vmem:[%s168 + $0x30] sm:$0xff]
        %v177 = vld [vmem:[%s168 + $0x38] sm:$0xff]
        %v178 = vld [vmem:[%s168 + $0x40] sm:$0xff]
        %v179 = vld [vmem:[%s168 + $0x48] sm:$0xff]
        %v180 = vld [vmem:[%s168 + $0x50] sm:$0xff]
        %v181 = vld [vmem:[%s168 + $0x58] sm:$0xff]
        %v182 = vld [vmem:[%s168 + $0x60] sm:$0xff]
        %v183 = vld [vmem:[%s168 + $0x68] sm:$0xff]
        %v184 = vld [vmem:[%s168 + $0x70] sm:$0xff]
        %v185 = vld [vmem:[%s168 + $0x78] sm:$0xff]
        %v186 = vld [vmem:[%s168 + $0x80] sm:$0xff]
        %v187 = vld [vmem:[%s168 + $0x88] sm:$0xff]
        %v188 = vld [vmem:[%s168 + $0x90] sm:$0xff]
        %v189 = vld [vmem:[%s168 + $0x98] sm:$0xff]
        %v190 = vld [vmem:[%s168 + $0xa0] sm:$0xff]
        %v191 = vld [vmem:[%s168 + $0xa8] sm:$0xff]
        %v192 = vld [vmem:[%s168 + $0xb0] sm:$0xff]
        %v193 = vld [vmem:[%s168 + $0xb8] sm:$0xff]
        %v194 = vld [vmem:[%s168 + $0xc0] sm:$0xff]
        %v195 = vld [vmem:[%s168 + $0xc8] sm:$0xff]
        %v196 = vld [vmem:[%s168 + $0xd0] sm:$0xff]
        %v197 = vld [vmem:[%s168 + $0xd8] sm:$0xff]
        %v198 = vld [vmem:[%s168 + $0xe0] sm:$0xff]
        %v199 = vld [vmem:[%s168 + $0xe8] sm:$0xff]
        %v200 = vld [vmem:[%s168 + $0xf0] sm:$0xff]
        %v201 = vld [vmem:[%s168 + $0xf8] sm:$0xff]
        %v202 = vld [vmem:[%s1] sm:$0xf]
        %v203 = vld [vmem:[%s1 + $0x4] sm:$0xf]
        %v204 = vld [vmem:[%s1 + $0x8] sm:$0xf]
        %v205 = vld [vmem:[%s1 + $0xc] sm:$0xf]
        %v206 = vld [vmem:[%s1 + $0x10] sm:$0xf]
        %v207 = vld [vmem:[%s1 + $0x14] sm:$0xf]
        %v208 = vld [vmem:[%s1 + $0x18] sm:$0xf]
        %v209 = vld [vmem:[%s1 + $0x1c] sm:$0xf]
        %v210 = vld [vmem:[%s1 + $0x20] sm:$0xf]
        %v211 = vld [vmem:[%s1 + $0x24] sm:$0xf]
        %v212 = vld [vmem:[%s1 + $0x28] sm:$0xf]
        %v213 = vld [vmem:[%s1 + $0x2c] sm:$0xf]
        %v214 = vld [vmem:[%s1 + $0x30] sm:$0xf]
        %v215 = vld [vmem:[%s1 + $0x34] sm:$0xf]
        %v216 = vld [vmem:[%s1 + $0x38] sm:$0xf]
        %v217 = vld [vmem:[%s1 + $0x3c] sm:$0xf]
        %v218 = vld [vmem:[%s1 + $0x40] sm:$0xf]
        %v219 = vld [vmem:[%s1 + $0x44] sm:$0xf]
        %v220 = vld [vmem:[%s1 + $0x48] sm:$0x3]
        %v253 = vunpack.c.l.b16 %v170
        %v254 = vunpack.c.h.b16 %v170
        %v255 = vunpack.c.l.b16 %v171
        %v256 = vunpack.c.h.b16 %v171
        %v257 = vunpack.c.l.b16 %v172
        %v258 = vunpack.c.h.b16 %v172
        %v259 = vunpack.c.l.b16 %v173
        %v260 = vunpack.c.h.b16 %v173
        %v261 = vunpack.c.l.b16 %v174
        %v262 = vunpack.c.h.b16 %v174
        %v263 = vunpack.c.l.b16 %v175
        %v264 = vunpack.c.h.b16 %v175
        %v265 = vunpack.c.l.b16 %v176
        %v266 = vunpack.c.h.b16 %v176
        %v267 = vunpack.c.l.b16 %v177
        %v268 = vunpack.c.h.b16 %v177
        %v269 = vunpack.c.l.b16 %v178
        %v270 = vunpack.c.h.b16 %v178
        %v271 = vunpack.c.l.b16 %v179
        %v272 = vunpack.c.h.b16 %v179
        %v273 = vunpack.c.l.b16 %v180
        %v274 = vunpack.c.h.b16 %v180
        %v275 = vunpack.c.l.b16 %v181
        %v276 = vunpack.c.h.b16 %v181
        %v277 = vunpack.c.l.b16 %v182
        %v278 = vunpack.c.h.b16 %v182
        %v279 = vunpack.c.l.b16 %v183
        %v280 = vunpack.c.h.b16 %v183
        %v281 = vunpack.c.l.b16 %v184
        %v282 = vunpack.c.h.b16 %v184
        %v283 = vunpack.c.l.b16 %v185
        %v284 = vunpack.c.h.b16 %v185
        %v285 = vunpack.c.l.b16 %v186
        %v286 = vunpack.c.h.b16 %v186
        %v287 = vunpack.c.l.b16 %v187
        %v288 = vunpack.c.h.b16 %v187
        %v289 = vunpack.c.l.b16 %v188
        %v290 = vunpack.c.h.b16 %v188
        %v291 = vunpack.c.l.b16 %v189
        %v292 = vunpack.c.h.b16 %v189
        %v293 = vunpack.c.l.b16 %v190
        %v294 = vunpack.c.h.b16 %v190
        %v295 = vunpack.c.l.b16 %v191
        %v296 = vunpack.c.h.b16 %v191
        %v297 = vunpack.c.l.b16 %v192
        %v298 = vunpack.c.h.b16 %v192
        %v299 = vunpack.c.l.b16 %v193
        %v300 = vunpack.c.h.b16 %v193
        %v301 = vunpack.c.l.b16 %v194
        %v302 = vunpack.c.h.b16 %v194
        %v303 = vunpack.c.l.b16 %v195
        %v304 = vunpack.c.h.b16 %v195
        %v305 = vunpack.c.l.b16 %v196
        %v306 = vunpack.c.h.b16 %v196
        %v307 = vunpack.c.l.b16 %v197
        %v308 = vunpack.c.h.b16 %v197
        %v309 = vunpack.c.l.b16 %v198
        %v310 = vunpack.c.h.b16 %v198
        %v311 = vunpack.c.l.b16 %v199
        %v312 = vunpack.c.h.b16 %v199
        %v313 = vunpack.c.l.b16 %v200
        %v314 = vunpack.c.h.b16 %v200
        %v315 = vunpack.c.l.b16 %v201
        %v316 = vunpack.c.h.b16 %v201
        %v317 = vpack.c.b16 %v255, %v253
        %v318 = vpack.c.b16 %v256, %v254
        %v319 = vpack.c.b16 %v259, %v257
        %v320 = vpack.c.b16 %v260, %v258
        %v321 = vpack.c.b16 %v263, %v261
        %v322 = vpack.c.b16 %v264, %v262
        %v323 = vpack.c.b16 %v267, %v265
        %v324 = vpack.c.b16 %v268, %v266
        %v325 = vpack.c.b16 %v271, %v269
        %v326 = vpack.c.b16 %v272, %v270
        %v327 = vpack.c.b16 %v275, %v273
        %v328 = vpack.c.b16 %v276, %v274
        %v329 = vpack.c.b16 %v279, %v277
        %v330 = vpack.c.b16 %v280, %v278
        %v331 = vpack.c.b16 %v283, %v281
        %v332 = vpack.c.b16 %v284, %v282
        %v333 = vpack.c.b16 %v287, %v285
        %v334 = vpack.c.b16 %v288, %v286
        %v335 = vpack.c.b16 %v291, %v289
        %v336 = vpack.c.b16 %v292, %v290
        %v337 = vpack.c.b16 %v295, %v293
        %v338 = vpack.c.b16 %v296, %v294
        %v339 = vpack.c.b16 %v299, %v297
        %v340 = vpack.c.b16 %v300, %v298
        %v341 = vpack.c.b16 %v303, %v301
        %v342 = vpack.c.b16 %v304, %v302
        %v343 = vpack.c.b16 %v307, %v305
        %v344 = vpack.c.b16 %v308, %v306
        %v345 = vpack.c.b16 %v311, %v309
        %v346 = vpack.c.b16 %v312, %v310
        %v347 = vpack.c.b16 %v315, %v313
        %v348 = vpack.c.b16 %v316, %v314
        %v384 = vunpack.c.l.b16 %v202
        %v385 = vunpack.c.l.b16 %v203
        %v386 = vunpack.c.l.b16 %v204
        %v387 = vunpack.c.l.b16 %v205
        %v388 = vunpack.c.l.b16 %v206
        %v389 = vunpack.c.l.b16 %v207
        %v390 = vunpack.c.l.b16 %v208
        %v391 = vunpack.c.l.b16 %v209
        %v392 = vunpack.c.l.b16 %v210
        %v393 = vunpack.c.l.b16 %v211
        %v394 = vunpack.c.l.b16 %v212
        %v395 = vunpack.c.l.b16 %v213
        %v396 = vunpack.c.l.b16 %v214
        %v397 = vunpack.c.l.b16 %v215
        %v398 = vunpack.c.l.b16 %v216
        %v399 = vunpack.c.l.b16 %v217
        %v400 = vunpack.c.l.b16 %v218
        %v401 = vunpack.c.l.b16 %v219
        %v402 = vunpack.c.l.b16 %v220
        %v403 = vpack.c.b16 %v385, %v384
        %v404 = vpack.c.b16 %v387, %v386
        %v405 = vpack.c.b16 %v389, %v388
        %v406 = vpack.c.b16 %v391, %v390
        %v407 = vpack.c.b16 %v393, %v392
        %v408 = vpack.c.b16 %v395, %v394
        %v409 = vpack.c.b16 %v397, %v396
        %v410 = vpack.c.b16 %v399, %v398
        %v411 = vpack.c.b16 %v401, %v400
        %v412 = vpack.c.b16 %v402, %v402
        %vm422 = vcmask 154624
        %v424 = vsel %vm422, %v318, 0
        %v427 = vsel %vm422, %v320, 0
        %v430 = vsel %vm422, %v322, 0
        %v433 = vsel %vm422, %v324, 0
        %v436 = vsel %vm422, %v326, 0
        %v439 = vsel %vm422, %v328, 0
        %v442 = vsel %vm422, %v330, 0
        %v445 = vsel %vm422, %v332, 0
        %v448 = vsel %vm422, %v334, 0
        %v451 = vsel %vm422, %v336, 0
        %v454 = vsel %vm422, %v338, 0
        %v457 = vsel %vm422, %v340, 0
        %v460 = vsel %vm422, %v342, 0
        %v463 = vsel %vm422, %v344, 0
        %v466 = vsel %vm422, %v346, 0
        %v469 = vsel %vm422, %v348, 0
        %vm471 = vcmask 1040384
        %vm472 = vcmask 1041408
        %v473 = vsel %vm471, 4294967295, 65535
        %v474 = vsel %vm472, %v473, 0
        %v476 = vand.u32 %v412, %v474
        %478 = vmatprep.subr.bf16.mxu0 0
        %479 = vmatpush1.bf16.msra.mxu0 %v410
        %480 = vmatprep.subr.bf16.mxu0 0
        %481 = vmatpush1.bf16.msra.mxu0 %v409
        %482 = vmatprep.subr.bf16.mxu0 0
        %483 = vmatpush1.bf16.msra.mxu0 %v408
        %484 = vmatprep.subr.bf16.mxu0 0
        %485 = vmatpush1.bf16.msra.mxu0 %v407
        %486 = vmatprep.subr.bf16.mxu0 0
        %487 = vmatpush1.bf16.msra.mxu0 %v406
        %488 = vmatprep.subr.bf16.mxu0 0
        %489 = vmatpush1.bf16.msra.mxu0 %v405
        %490 = vmatprep.subr.bf16.mxu0 0
        %491 = vmatpush1.bf16.msra.mxu0 %v404
        %492 = vmatprep.subr.bf16.mxu0 0
        %493 = vmatpush1.bf16.msra.mxu0 %v403
        %494 = vmatprep.subr.bf16.mxu0 0
        %495 = vmatpush2.bf16.msra.mxu0 0
        %496 = vmatprep.subr.bf16.mxu0 0
        %497 = vmatpush2.bf16.msra.mxu0 0
        %498 = vmatprep.subr.bf16.mxu0 0
        %499 = vmatpush2.bf16.msra.mxu0 0
        %500 = vmatprep.subr.bf16.mxu0 0
        %501 = vmatpush2.bf16.msra.mxu0 0
        %502 = vmatprep.subr.bf16.mxu0 0
        %503 = vmatpush2.bf16.msra.mxu0 0
        %504 = vmatprep.subr.bf16.mxu0 0
        %505 = vmatpush2.bf16.msra.mxu0 0
        %506 = vmatprep.subr.bf16.mxu0 0
        %507 = vmatpush2.bf16.msra.mxu0 %v476
        %508 = vmatprep.subr.bf16.mxu0 0
        %509 = vmatpush2.bf16.msra.mxu0 %v411
        %510 = vmatprep.mubr.bf16.mxu0 %v424
        %511 = vmatmul.mubr.bf16.gmra.mxu0 %v317
        %v512 = vpop.f32.mrf.mxu0
        %v513 = vadd.f32 0.0, %v512
        %v514 = vpop.f32.mrf.mxu0
        %v515 = vpop.f32.mrf.mxu0
        %v516 = vadd.f32 0.0, %v515
        %v517 = vpop.f32.mrf.mxu0
        %518 = vmatprep.mubr.bf16.mxu0 %v427
        %519 = vmatmul.mubr.bf16.gmra.mxu0 %v319
        %v520 = vpop.f32.mrf.mxu0
        %v521 = vadd.f32 0.0, %v520
        %v522 = vpop.f32.mrf.mxu0
        %v523 = vpop.f32.mrf.mxu0
        %v524 = vadd.f32 0.0, %v523
        %v525 = vpop.f32.mrf.mxu0
        %526 = vmatprep.mubr.bf16.mxu0 %v430
        %527 = vmatmul.mubr.bf16.gmra.mxu0 %v321
        %v528 = vpop.f32.mrf.mxu0
        %v529 = vadd.f32 0.0, %v528
        %v530 = vpop.f32.mrf.mxu0
        %v531 = vpop.f32.mrf.mxu0
        %v532 = vadd.f32 0.0, %v531
        %v533 = vpop.f32.mrf.mxu0
        %534 = vmatprep.mubr.bf16.mxu0 %v433
        %535 = vmatmul.mubr.bf16.gmra.mxu0 %v323
        %v536 = vpop.f32.mrf.mxu0
        %v537 = vadd.f32 0.0, %v536
        %v538 = vpop.f32.mrf.mxu0
        %v539 = vpop.f32.mrf.mxu0
        %v540 = vadd.f32 0.0, %v539
        %v541 = vpop.f32.mrf.mxu0
        %542 = vmatprep.mubr.bf16.mxu0 %v436
        %543 = vmatmul.mubr.bf16.gmra.mxu0 %v325
        %v544 = vpop.f32.mrf.mxu0
        %v545 = vadd.f32 0.0, %v544
        %v546 = vpop.f32.mrf.mxu0
        %v547 = vpop.f32.mrf.mxu0
        %v548 = vadd.f32 0.0, %v547
        %v549 = vpop.f32.mrf.mxu0
        %550 = vmatprep.mubr.bf16.mxu0 %v439
        %551 = vmatmul.mubr.bf16.gmra.mxu0 %v327
        %v552 = vpop.f32.mrf.mxu0
        %v553 = vadd.f32 0.0, %v552
        %v554 = vpop.f32.mrf.mxu0
        %v555 = vpop.f32.mrf.mxu0
        %v556 = vadd.f32 0.0, %v555
        %v557 = vpop.f32.mrf.mxu0
        %558 = vmatprep.mubr.bf16.mxu0 %v442
        %559 = vmatmul.mubr.bf16.gmra.mxu0 %v329
        %v560 = vpop.f32.mrf.mxu0
        %v561 = vadd.f32 0.0, %v560
        %v562 = vpop.f32.mrf.mxu0
        %v563 = vpop.f32.mrf.mxu0
        %v564 = vadd.f32 0.0, %v563
        %v565 = vpop.f32.mrf.mxu0
        %566 = vmatprep.mubr.bf16.mxu0 %v445
        %567 = vmatmul.mubr.bf16.gmra.mxu0 %v331
        %v568 = vpop.f32.mrf.mxu0
        %v569 = vadd.f32 0.0, %v568
        %v570 = vpop.f32.mrf.mxu0
        %v571 = vpop.f32.mrf.mxu0
        %v572 = vadd.f32 0.0, %v571
        %v573 = vpop.f32.mrf.mxu0
        %574 = vmatprep.mubr.bf16.mxu0 %v448
        %575 = vmatmul.mubr.bf16.gmra.mxu0 %v333
        %v576 = vpop.f32.mrf.mxu0
        %v577 = vadd.f32 0.0, %v576
        %v578 = vpop.f32.mrf.mxu0
        %v579 = vpop.f32.mrf.mxu0
        %v580 = vadd.f32 0.0, %v579
        %v581 = vpop.f32.mrf.mxu0
        %582 = vmatprep.mubr.bf16.mxu0 %v451
        %583 = vmatmul.mubr.bf16.gmra.mxu0 %v335
        %v584 = vpop.f32.mrf.mxu0
        %v585 = vadd.f32 0.0, %v584
        %v586 = vpop.f32.mrf.mxu0
        %v587 = vpop.f32.mrf.mxu0
        %v588 = vadd.f32 0.0, %v587
        %v589 = vpop.f32.mrf.mxu0
        %590 = vmatprep.mubr.bf16.mxu0 %v454
        %591 = vmatmul.mubr.bf16.gmra.mxu0 %v337
        %v592 = vpop.f32.mrf.mxu0
        %v593 = vadd.f32 0.0, %v592
        %v594 = vpop.f32.mrf.mxu0
        %v595 = vpop.f32.mrf.mxu0
        %v596 = vadd.f32 0.0, %v595
        %v597 = vpop.f32.mrf.mxu0
        %598 = vmatprep.mubr.bf16.mxu0 %v457
        %599 = vmatmul.mubr.bf16.gmra.mxu0 %v339
        %v600 = vpop.f32.mrf.mxu0
        %v601 = vadd.f32 0.0, %v600
        %v602 = vpop.f32.mrf.mxu0
        %v603 = vpop.f32.mrf.mxu0
        %v604 = vadd.f32 0.0, %v603
        %v605 = vpop.f32.mrf.mxu0
        %606 = vmatprep.mubr.bf16.mxu0 %v460
        %607 = vmatmul.mubr.bf16.gmra.mxu0 %v341
        %v608 = vpop.f32.mrf.mxu0
        %v609 = vadd.f32 0.0, %v608
        %v610 = vpop.f32.mrf.mxu0
        %v611 = vpop.f32.mrf.mxu0
        %v612 = vadd.f32 0.0, %v611
        %v613 = vpop.f32.mrf.mxu0
        %614 = vmatprep.mubr.bf16.mxu0 %v463
        %615 = vmatmul.mubr.bf16.gmra.mxu0 %v343
        %v616 = vpop.f32.mrf.mxu0
        %v617 = vadd.f32 0.0, %v616
        %v618 = vpop.f32.mrf.mxu0
        %v619 = vpop.f32.mrf.mxu0
        %v620 = vadd.f32 0.0, %v619
        %v621 = vpop.f32.mrf.mxu0
        %622 = vmatprep.mubr.bf16.mxu0 %v466
        %623 = vmatmul.mubr.bf16.gmra.mxu0 %v345
        %v624 = vpop.f32.mrf.mxu0
        %v625 = vadd.f32 0.0, %v624
        %v626 = vpop.f32.mrf.mxu0
        %v627 = vpop.f32.mrf.mxu0
        %v628 = vadd.f32 0.0, %v627
        %v629 = vpop.f32.mrf.mxu0
        %630 = vmatprep.mubr.bf16.mxu0 %v469
        %631 = vmatmul.mubr.bf16.gmra.mxu0 %v347
        %v632 = vpop.f32.mrf.mxu0
        %v633 = vadd.f32 0.0, %v632
        %v634 = vpop.f32.mrf.mxu0
        %v635 = vpop.f32.mrf.mxu0
        %v636 = vadd.f32 0.0, %v635
        %v637 = vpop.f32.mrf.mxu0
        %638 = vdwg.mxu0
        %vm639 = vcmask 523264
        %640 = vst.msk [vmem:[#allocation2] sm:$0xff] %vm639, %v513
        %641 = vst.msk [vmem:[#allocation2 + $0x8] sm:$0xff] %vm639, %v516
        %642 = vst.msk [vmem:[#allocation2 + $0x10] sm:$0xff] %vm639, %v521
        %643 = vst.msk [vmem:[#allocation2 + $0x18] sm:$0xff] %vm639, %v524
        %644 = vst.msk [vmem:[#allocation2 + $0x20] sm:$0xff] %vm639, %v529
        %645 = vst.msk [vmem:[#allocation2 + $0x28] sm:$0xff] %vm639, %v532
        %646 = vst.msk [vmem:[#allocation2 + $0x30] sm:$0xff] %vm639, %v537
        %647 = vst.msk [vmem:[#allocation2 + $0x38] sm:$0xff] %vm639, %v540
        %648 = vst.msk [vmem:[#allocation2 + $0x40] sm:$0xff] %vm639, %v545
        %649 = vst.msk [vmem:[#allocation2 + $0x48] sm:$0xff] %vm639, %v548
        %650 = vst.msk [vmem:[#allocation2 + $0x50] sm:$0xff] %vm639, %v553
        %651 = vst.msk [vmem:[#allocation2 + $0x58] sm:$0xff] %vm639, %v556
        %652 = vst.msk [vmem:[#allocation2 + $0x60] sm:$0xff] %vm639, %v561
        %653 = vst.msk [vmem:[#allocation2 + $0x68] sm:$0xff] %vm639, %v564
        %654 = vst.msk [vmem:[#allocation2 + $0x70] sm:$0xff] %vm639, %v569
        %655 = vst.msk [vmem:[#allocation2 + $0x78] sm:$0xff] %vm639, %v572
        %656 = vst.msk [vmem:[#allocation2 + $0x80] sm:$0xff] %vm639, %v577
        %657 = vst.msk [vmem:[#allocation2 + $0x88] sm:$0xff] %vm639, %v580
        %658 = vst.msk [vmem:[#allocation2 + $0x90] sm:$0xff] %vm639, %v585
        %659 = vst.msk [vmem:[#allocation2 + $0x98] sm:$0xff] %vm639, %v588
        %660 = vst.msk [vmem:[#allocation2 + $0xa0] sm:$0xff] %vm639, %v593
        %661 = vst.msk [vmem:[#allocation2 + $0xa8] sm:$0xff] %vm639, %v596
        %662 = vst.msk [vmem:[#allocation2 + $0xb0] sm:$0xff] %vm639, %v601
        %663 = vst.msk [vmem:[#allocation2 + $0xb8] sm:$0xff] %vm639, %v604
        %664 = vst.msk [vmem:[#allocation2 + $0xc0] sm:$0xff] %vm639, %v609
        %665 = vst.msk [vmem:[#allocation2 + $0xc8] sm:$0xff] %vm639, %v612
        %666 = vst.msk [vmem:[#allocation2 + $0xd0] sm:$0xff] %vm639, %v617
        %667 = vst.msk [vmem:[#allocation2 + $0xd8] sm:$0xff] %vm639, %v620
        %668 = vst.msk [vmem:[#allocation2 + $0xe0] sm:$0xff] %vm639, %v625
        %669 = vst.msk [vmem:[#allocation2 + $0xe8] sm:$0xff] %vm639, %v628
        %670 = vst.msk [vmem:[#allocation2 + $0xf0] sm:$0xff] %vm639, %v633
        %671 = vst.msk [vmem:[#allocation2 + $0xf8] sm:$0xff] %vm639, %v636
        %v672 = vld [vmem:[%s2] sm:$0x1]
        loop: start=0, step=1, limit=16
        $region33: #{tpu_custom_call.1} parent=31 // loop_pre_header
          _
        $region34: #{tpu_custom_call.1} parent=31 // loop_header
          %s674 = sphi 0, %s678
          %p675 = scmp.ge.s32.totalorder %s674, 16
        $region35: #{tpu_custom_call.1} parent=31 // loop_header_branch
          %677 = sbr.rel (%p675) target = $region39
        $region36: #{tpu_custom_call.1} parent=31 // loop_body
          %s679 = smul.u32 %s674, 16
          %s680 = scalar_lea.vmem [#allocation2], %s679
          %v681 = vld [vmem:[%s680] sm:$0xff]
          %v682 = vld [vmem:[%s680 + $0x8] sm:$0xff]
          %v684 = vlaneseq
          %v685 = vshrl.u32 %v684, 7
          %v686 = vsub.s32 0, %v685
          %v687 = vrot.slane %v672, %v686
          %v689 = vadd.f32 %v681, %v687
          %v690 = vadd.f32 %v682, %v687
          %v691 = vmax.f32 %v689, 0.0
          %v692 = vmax.f32 %v690, 0.0
          %v693 = vpack.c.bf16 %v692, %v691
          %v695 = vunpack.c.l.b16 %v693
          %v696 = vunpack.c.h.b16 %v693
          %v697 = vpack.c.b16 %v695, %v695
          %v698 = vpack.c.b16 %v696, %v696
          %s701 = smul.u32 %s674, 2
          %s702 = smul.addr %s701, 4
          %s703 = scalar_lea.vmem %s163, %s702 [#allocation3]
          %vm704 = vcmask 519168
          %705 = vst.msk [vmem:[%s703] sm:$0xf] %vm704, %v697
          %706 = vst.msk [vmem:[%s703 + $0x4] sm:$0xf] %vm704, %v698
        $region37: #{tpu_custom_call.1} parent=31 // loop_footer
          %s678 = sadd.s32 1, %s674
        $region38: #{tpu_custom_call.1} parent=31 // loop_footer_branch
          %673 = sbr.rel target = $region34
        $region39: #{tpu_custom_call.1} parent=31 // loop_exit
          _
        %s707 = sand.u32 %s93, 1
        %s708 = scalar_lea.sflag [#allocation4], %s707
        %s709 = sand.u32 %s93, 1
        %s710 = smul.addr %s709, 128
        %s711 = scalar_lea.vmem [#allocation3], %s710
        // Predicated region
        $region40: #{tpu_custom_call.1} parent=31 // pred_check
          %p712 = pneg %p103
        $region41: #{tpu_custom_call.1} parent=31 // pred_check_branch
          %714 = sbr.rel (%p712) target = $region43
        $region42: #{tpu_custom_call.1} parent=31 // pred_region
          %s716 = ssub.s32 2048, 2048
          %717 = vsyncadd %s708, %s716
          %s718 = smul.addr %s17, 32
          %s719 = smul.addr %s718, 64
          %s720 = scalar_lea.hbm %s3, %s719
          %s721 = sshll.u32 %s711, 4
          %s722 = int_to_ptr.vmem [resolvable:$true] %s721
          %727 = dma.vmem_to_hbm [thread:$0]  %s722, 2048, %s720, %s708, 64, 64, 4
        $region43: #{tpu_custom_call.1} parent=31 // pred_fallthru
          _
      $region32: #{tpu_custom_call.1} parent=5 // pred_fallthru
        _
      %p728 = scmp.le.s32.totalorder 2, %s12
      // Predicated region
      $region44: #{tpu_custom_call.1} parent=5 // pred_check
        %p729 = pneg %p728
      $region45: #{tpu_custom_call.1} parent=5 // pred_check_branch
        %731 = sbr.rel (%p729) target = $region47
      $region46: #{tpu_custom_call.1} parent=5 // pred_region
        %s732 = ssub.s32 %s12, 2
        // Predicated region
        $region48: #{tpu_custom_call.1} parent=46 // pred_check
          %p733 = pneg %p109
        $region49: #{tpu_custom_call.1} parent=46 // pred_check_branch
          %735 = sbr.rel (%p733) target = $region51
        $region50: #{tpu_custom_call.1} parent=46 // pred_region
          %s736 = sand.u32 %s94, 1
          %s737 = scalar_lea.sflag [#allocation4], %s736
          %s738 = sand.u32 %s94, 1
          %s739 = smul.addr %s738, 128
          %s740 = scalar_lea.vmem [#allocation3], %s739
          %741 = dma.done %s737, 2048
        $region51: #{tpu_custom_call.1} parent=46 // pred_fallthru
          _
      $region47: #{tpu_custom_call.1} parent=5 // pred_fallthru
        _
    $region6: #{tpu_custom_call.1} parent=1 // loop_footer
      %s16 = sadd.s32 1, %s12
    $region7: #{tpu_custom_call.1} parent=1 // loop_footer_branch
      %11 = sbr.rel target = $region3
    $region8: #{tpu_custom_call.1} parent=1 // loop_exit
      _
    %742 = vsyncpa [#allocation4], 1
    %s743 = scalar_lea.sflag [#allocation4], 1
    %744 = vsyncpa %s743, 1

</llo_original>
